<compile_context>
chip_gen: v5e
topology: v5e:2x2
jax: 0.10.0
libtpu: 0.0.40
codegen_flags: <defaults>
</compile_context>

<pallas_src>
import jax
import jax.numpy as jnp
from jax import lax
from jax.experimental import pallas as pl
from jax.experimental.pallas import tpu as pltpu


def a_cam_kernel(x_ref, pool_ref, w1t_ref, b1_ref, w2t_ref, b2_ref,
                 expand_ref, out_ref):
    # x block: (Bt, C*W), lane-dense along the last axis.
    x = x_ref[...]

    hp = jax.lax.Precision.HIGHEST

    # Channel means via pooling matmul: (Bt, C*W) @ (C*W, C) -> (Bt, C).
    # pool already carries the 1/W factor (sum * 1/W instead of mean/divide).
    m = jnp.dot(x, pool_ref[...], precision=hp,
                preferred_element_type=jnp.float32)

    # Squeeze-excite MLP, batched across the Bt rows (multi-column MXU RHS).
    h = jnp.dot(m, w1t_ref[...], precision=hp,
                preferred_element_type=jnp.float32) + b1_ref[...]
    h = jnp.maximum(h, 0.0)                                   # ReLU

    # conv2 with BatchNorm (eval) folded into the weights/bias in the wrapper.
    c2 = jnp.dot(h, w2t_ref[...], precision=hp,
                 preferred_element_type=jnp.float32) + b2_ref[...]

    # Residual folded: out = x * sigmoid(c2) + x = x * (1 + sigmoid(c2)).
    s = 1.0 + jax.nn.sigmoid(c2)                              # (Bt, C)

    # Broadcast per-channel scale to per-element scale with a 0/1 expand
    # matmul: (Bt, C) @ (C, C*W) -> (Bt, C*W). Stays lane-dense, no relayout.
    scale = jnp.dot(s, expand_ref[...], precision=hp,
                    preferred_element_type=jnp.float32)

    out_ref[...] = (x * scale.astype(x.dtype)).astype(out_ref.dtype)


def _pick_block_batch(B, per_batch_bytes, target_bytes=2 * 1024 * 1024):
    """Largest legal batch-block: whole B if it fits, else a multiple of 8
    that divides B and fits the target block size."""
    if B * per_batch_bytes <= target_bytes:
        return B
    best = None
    bt = 8
    while bt <= B:
        if B % bt == 0 and bt * per_batch_bytes <= target_bytes:
            best = bt
        bt += 8
    return best if best is not None else B


def a_cam_forward(x, params, *, vmem_limit_bytes=32 * 1024 * 1024):
    """x: (B, C, W) float32. params: dict from init_params (raw, unfolded)."""
    B, C, W = x.shape
    CW = C * W
    C2 = params["w1"].shape[0]
    dt = x.dtype

    # ---- fold BatchNorm1d (eval mode) into conv2's weight/bias ----
    bn_scale = params["bn_scale"]                     # (C, 1)
    bn_shift = params["bn_shift"]                     # (C, 1)
    w2f = params["w2"] * bn_scale                     # (C, C/2)
    b2f = params["b2"] * bn_scale + bn_shift          # (C, 1)

    # Transposed weights / row-vector biases for batched (rows = Bt) matmuls.
    w1t = params["w1"].T.astype(dt)                   # (C, C/2)
    b1r = params["b1"].reshape(1, C2).astype(dt)      # (1, C/2)
    w2t = w2f.T.astype(dt)                            # (C/2, C)
    b2r = b2f.reshape(1, C).astype(dt)                # (1, C)

    # Constant pooling / expand matrices (channel <-> channel*W).
    expand = jnp.repeat(jnp.eye(C, dtype=dt), W, axis=1)       # (C, C*W)
    pool = expand.T * jnp.asarray(1.0 / W, dt)                 # (C*W, C), mean

    # Lane-dense view of the activations.
    x2 = x.reshape(B, CW)

    Bt = _pick_block_batch(B, CW * x.dtype.itemsize)
    grid = (B // Bt,)

    out2 = pl.pallas_call(
        a_cam_kernel,
        out_shape=jax.ShapeDtypeStruct((B, CW), dt),
        grid=grid,
        in_specs=[
            pl.BlockSpec((Bt, CW), lambda i: (i, 0)),   # x (lane-dense)
            pl.BlockSpec((CW, C), lambda i: (0, 0)),    # pooling matrix
            pl.BlockSpec((C, C2), lambda i: (0, 0)),    # w1^T
            pl.BlockSpec((1, C2), lambda i: (0, 0)),    # b1
            pl.BlockSpec((C2, C), lambda i: (0, 0)),    # (bn*w2)^T
            pl.BlockSpec((1, C), lambda i: (0, 0)),     # bn-folded b2
            pl.BlockSpec((C, CW), lambda i: (0, 0)),    # expand matrix
        ],
        out_specs=pl.BlockSpec((Bt, CW), lambda i: (i, 0)),
        compiler_params=pltpu.CompilerParams(
            dimension_semantics=("parallel",),
            vmem_limit_bytes=vmem_limit_bytes),
    )(x2, pool, w1t, b1r, w2t, b2r, expand)

    return out2.reshape(B, C, W)


def init_params(key, nb_filter):
    """Deterministic parameter init matching the PyTorch module's shapes."""
    C = nb_filter
    C2 = C // 2
    k1, k2, k3, k4, k5, k6, k7, k8 = jax.random.split(key, 8)

    # Conv1d(C, C/2, 1): weight (C/2, C, 1) -> (C/2, C); bias (C/2,)
    w1 = jax.random.normal(k1, (C2, C), jnp.float32) * 0.1
    b1 = jax.random.normal(k2, (C2, 1), jnp.float32) * 0.1
    # Conv1d(C/2, C, 1): weight (C, C/2, 1) -> (C, C/2); bias (C,)
    w2 = jax.random.normal(k3, (C, C2), jnp.float32) * 0.1
    b2 = jax.random.normal(k4, (C, 1), jnp.float32) * 0.1

    # BatchNorm1d(C) parameters (eval-mode / running-stats semantics)
    gamma = 1.0 + 0.1 * jax.random.normal(k5, (C, 1), jnp.float32)
    beta = 0.1 * jax.random.normal(k6, (C, 1), jnp.float32)
    running_mean = 0.1 * jax.random.normal(k7, (C, 1), jnp.float32)
    running_var = jnp.abs(1.0 + 0.1 * jax.random.normal(k8, (C, 1), jnp.float32))
    eps = 1e-5

    bn_scale = gamma / jnp.sqrt(running_var + eps)
    bn_shift = beta - running_mean * bn_scale
    # TODO(synk): training-mode BatchNorm (batch statistics) not implemented;
    # this uses inference semantics with running stats folded to scale/shift.

    return {"w1": w1, "b1": b1, "w2": w2, "b2": b2,
            "bn_scale": bn_scale, "bn_shift": bn_shift}


def a_cam_reference(x, params):
    """Pure-JAX reference (unfolded params) for correctness checking."""
    c = jnp.mean(x, axis=-1, keepdims=True)                       # (B, C, 1)
    h = jnp.einsum("oc,bci->boi", params["w1"], c,
                   precision=jax.lax.Precision.HIGHEST) + params["b1"][None]
    h = jnp.maximum(h, 0.0)
    c2 = jnp.einsum("oc,bci->boi", params["w2"], h,
                    precision=jax.lax.Precision.HIGHEST) + params["b2"][None]
    c2 = c2 * params["bn_scale"][None] + params["bn_shift"][None]
    s = jax.nn.sigmoid(c2)
    return x * s + x


if __name__ == "__main__":
    key = jax.random.PRNGKey(0)
    k_x, k_p = jax.random.split(key)

    B, C, W = 2, 8, 16            # batch=2, nb_filter=8, width=16 (C*W = 128)
    x = jax.random.normal(k_x, (B, C, W), jnp.float32)
    params = init_params(k_p, C)

    out = a_cam_forward(x, params)
    out = jax.block_until_ready(out)

    ref = a_cam_reference(x, params)
    assert out.shape == (B, C, W)
    assert jnp.allclose(out, ref, atol=1e-4, rtol=1e-4), "mismatch vs reference"

    print("KERNEL_OK")
</pallas_src>

<mosaic_0001>
module attributes {stable_mosaic.version = 11 : i64} {
  func.func @a_cam_kernel(%arg0: i32, %arg1: memref<2x128xf32, #tpu.memory_space<vmem>>, %arg2: memref<128x8xf32, #tpu.memory_space<vmem>>, %arg3: memref<8x4xf32, #tpu.memory_space<vmem>>, %arg4: memref<1x4xf32, #tpu.memory_space<vmem>>, %arg5: memref<4x8xf32, #tpu.memory_space<vmem>>, %arg6: memref<1x8xf32, #tpu.memory_space<vmem>>, %arg7: memref<8x128xf32, #tpu.memory_space<vmem>>, %arg8: memref<2x128xf32, #tpu.memory_space<vmem>>) attributes {dimension_semantics = [#tpu.dimension_semantics<parallel>], iteration_bounds = array<i64: 1>, scalar_prefetch = 0 : i64, scratch_operands = 0 : i64, tpu.core_type = #tpu.core_type<tc>, window_params = [{transform_indices = @transform_0, window_bounds = array<i64: 2, 128>}, {pipeline_mode = #tpu.pipeline_mode<synchronous>, transform_indices = @transform_1, window_bounds = array<i64: 128, 8>}, {pipeline_mode = #tpu.pipeline_mode<synchronous>, transform_indices = @transform_2, window_bounds = array<i64: 8, 4>}, {pipeline_mode = #tpu.pipeline_mode<synchronous>, transform_indices = @transform_3, window_bounds = array<i64: 1, 4>}, {pipeline_mode = #tpu.pipeline_mode<synchronous>, transform_indices = @transform_4, window_bounds = array<i64: 4, 8>}, {pipeline_mode = #tpu.pipeline_mode<synchronous>, transform_indices = @transform_5, window_bounds = array<i64: 1, 8>}, {pipeline_mode = #tpu.pipeline_mode<synchronous>, transform_indices = @transform_6, window_bounds = array<i64: 8, 128>}, {transform_indices = @transform_7, window_bounds = array<i64: 2, 128>}]} {
    %c0 = arith.constant 0 : index
    %c0_0 = arith.constant 0 : index
    %0 = vector.load %arg1[%c0, %c0_0] : memref<2x128xf32, #tpu.memory_space<vmem>>, vector<2x128xf32>
    %c0_1 = arith.constant 0 : index
    %c0_2 = arith.constant 0 : index
    %1 = vector.load %arg2[%c0_1, %c0_2] : memref<128x8xf32, #tpu.memory_space<vmem>>, vector<128x8xf32>
    %cst = arith.constant dense<0.000000e+00> : vector<2x8xf32>
    %2 = tpu.matmul %0, %1, %cst {dimension_numbers = #tpu.dot_dimension_numbers<[1], [0], [0], [1], [0, 0, 1, 1], [], []>, precision = #tpu.contract_precision<fp32>} : vector<2x128xf32>, vector<128x8xf32>, vector<2x8xf32> -> vector<2x8xf32>
    %c0_3 = arith.constant 0 : index
    %c0_4 = arith.constant 0 : index
    %3 = vector.load %arg3[%c0_3, %c0_4] : memref<8x4xf32, #tpu.memory_space<vmem>>, vector<8x4xf32>
    %cst_5 = arith.constant dense<0.000000e+00> : vector<2x4xf32>
    %4 = tpu.matmul %2, %3, %cst_5 {dimension_numbers = #tpu.dot_dimension_numbers<[1], [0], [0], [1], [0, 0, 1, 1], [], []>, precision = #tpu.contract_precision<fp32>} : vector<2x8xf32>, vector<8x4xf32>, vector<2x4xf32> -> vector<2x4xf32>
    %c0_6 = arith.constant 0 : index
    %c0_7 = arith.constant 0 : index
    %5 = vector.load %arg4[%c0_6, %c0_7] : memref<1x4xf32, #tpu.memory_space<vmem>>, vector<1x4xf32>
    %6 = vector.broadcast %5 : vector<1x4xf32> to vector<2x4xf32>
    %7 = arith.addf %4, %6 : vector<2x4xf32>
    %cst_8 = arith.constant 0.000000e+00 : f32
    %8 = vector.broadcast %cst_8 : f32 to vector<2x4xf32>
    %9 = arith.maximumf %7, %8 : vector<2x4xf32>
    %c0_9 = arith.constant 0 : index
    %c0_10 = arith.constant 0 : index
    %10 = vector.load %arg5[%c0_9, %c0_10] : memref<4x8xf32, #tpu.memory_space<vmem>>, vector<4x8xf32>
    %cst_11 = arith.constant dense<0.000000e+00> : vector<2x8xf32>
    %11 = tpu.matmul %9, %10, %cst_11 {dimension_numbers = #tpu.dot_dimension_numbers<[1], [0], [0], [1], [0, 0, 1, 1], [], []>, precision = #tpu.contract_precision<fp32>} : vector<2x4xf32>, vector<4x8xf32>, vector<2x8xf32> -> vector<2x8xf32>
    %c0_12 = arith.constant 0 : index
    %c0_13 = arith.constant 0 : index
    %12 = vector.load %arg6[%c0_12, %c0_13] : memref<1x8xf32, #tpu.memory_space<vmem>>, vector<1x8xf32>
    %13 = vector.broadcast %12 : vector<1x8xf32> to vector<2x8xf32>
    %14 = arith.addf %11, %13 : vector<2x8xf32>
    %15 = arith.negf %14 : vector<2x8xf32>
    %16 = math.exp %15 : vector<2x8xf32>
    %cst_14 = arith.constant 1.000000e+00 : f32
    %17 = vector.broadcast %cst_14 : f32 to vector<2x8xf32>
    %18 = arith.addf %17, %16 : vector<2x8xf32>
    %19 = arith.divf %17, %18 : vector<2x8xf32>
    %cst_15 = arith.constant 1.000000e+00 : f32
    %20 = vector.broadcast %cst_15 : f32 to vector<2x8xf32>
    %21 = arith.addf %20, %19 : vector<2x8xf32>
    %c0_16 = arith.constant 0 : index
    %c0_17 = arith.constant 0 : index
    %22 = vector.load %arg7[%c0_16, %c0_17] : memref<8x128xf32, #tpu.memory_space<vmem>>, vector<8x128xf32>
    %cst_18 = arith.constant dense<0.000000e+00> : vector<2x128xf32>
    %23 = tpu.matmul %21, %22, %cst_18 {dimension_numbers = #tpu.dot_dimension_numbers<[1], [0], [0], [1], [0, 0, 1, 1], [], []>, precision = #tpu.contract_precision<fp32>} : vector<2x8xf32>, vector<8x128xf32>, vector<2x128xf32> -> vector<2x128xf32>
    %24 = arith.mulf %0, %23 : vector<2x128xf32>
    %c0_19 = arith.constant 0 : index
    %c0_20 = arith.constant 0 : index
    %25 = vector.load %arg8[%c0_19, %c0_20] : memref<2x128xf32, #tpu.memory_space<vmem>>, vector<2x128xf32>
    tpu.vector_store %arg8[%c0_19, %c0_20], %24 {strides = array<i32>} : memref<2x128xf32, #tpu.memory_space<vmem>>, vector<2x128xf32>,
    return
  }
  func.func @transform_0(%arg0: i32) -> (i32, i32) {
    %c0_i32 = arith.constant 0 : i32
    %c0_i32_0 = arith.constant 0 : i32
    return %arg0, %c0_i32 : i32, i32
  }
  func.func @transform_1(%arg0: i32) -> (i32, i32) {
    %c0_i32 = arith.constant 0 : i32
    %c0_i32_0 = arith.constant 0 : i32
    %c0_i32_1 = arith.constant 0 : i32
    return %c0_i32, %c0_i32_0 : i32, i32
  }
  func.func @transform_2(%arg0: i32) -> (i32, i32) {
    %c0_i32 = arith.constant 0 : i32
    %c0_i32_0 = arith.constant 0 : i32
    %c0_i32_1 = arith.constant 0 : i32
    return %c0_i32, %c0_i32_0 : i32, i32
  }
  func.func @transform_3(%arg0: i32) -> (i32, i32) {
    %c0_i32 = arith.constant 0 : i32
    %c0_i32_0 = arith.constant 0 : i32
    %c0_i32_1 = arith.constant 0 : i32
    return %c0_i32, %c0_i32_0 : i32, i32
  }
  func.func @transform_4(%arg0: i32) -> (i32, i32) {
    %c0_i32 = arith.constant 0 : i32
    %c0_i32_0 = arith.constant 0 : i32
    %c0_i32_1 = arith.constant 0 : i32
    return %c0_i32, %c0_i32_0 : i32, i32
  }
  func.func @transform_5(%arg0: i32) -> (i32, i32) {
    %c0_i32 = arith.constant 0 : i32
    %c0_i32_0 = arith.constant 0 : i32
    %c0_i32_1 = arith.constant 0 : i32
    return %c0_i32, %c0_i32_0 : i32, i32
  }
  func.func @transform_6(%arg0: i32) -> (i32, i32) {
    %c0_i32 = arith.constant 0 : i32
    %c0_i32_0 = arith.constant 0 : i32
    %c0_i32_1 = arith.constant 0 : i32
    return %c0_i32, %c0_i32_0 : i32, i32
  }
  func.func @transform_7(%arg0: i32) -> (i32, i32) {
    %c0_i32 = arith.constant 0 : i32
    %c0_i32_0 = arith.constant 0 : i32
    return %arg0, %c0_i32 : i32, i32
  }
}

</mosaic_0001>

<llo_original>
// kernel: tpu_custom_call.1
$region0: #{tpu_custom_call.1}
  #allocation0 [shape = 'u32[]', space=smem, size = 0x4, offset = 0x4, fixed_abs, tag = 'smem constant byte address 0x4 - core index']
  #allocation1 [shape = 'u32[72,128]{1,0:T(1,128)}', space=vmem, size = 0x9000, scoped, tag = 'internal scratch']
  %s0 = inlined_call_operand.vmem [shape: f32[2,128], index: 0, kind: input, shape index: {}]
  %s1 = inlined_call_operand.vmem [shape: f32[128,8], index: 1, kind: input, shape index: {}]
  %s2 = inlined_call_operand.vmem [shape: f32[8,4], index: 2, kind: input, shape index: {}]
  %s3 = inlined_call_operand.vmem [shape: f32[1,4], index: 3, kind: input, shape index: {}]
  %s4 = inlined_call_operand.vmem [shape: f32[4,8], index: 4, kind: input, shape index: {}]
  %s5 = inlined_call_operand.vmem [shape: f32[1,8], index: 5, kind: input, shape index: {}]
  %s6 = inlined_call_operand.vmem [shape: f32[8,128], index: 6, kind: input, shape index: {}]
  %s7 = inlined_call_operand.hbm [shape: f32[2,128], index: 7, kind: output, shape index: {}]
  %s8 = sld [smem:[#allocation0]]
  $region38: #{tpu_custom_call.1} parent=0
    _
  %s10 = ssub.s32 1, %s8
  %s11 = scalar_select 0, %s10, %s8
  $region1: #{tpu_custom_call.1} parent=0
    #allocation2 [shape = 'u8[1024]{0}', space=vmem, size = 0x400, scoped, tag = 'output window, operand 0, single buffered']
    #allocation3 [shape = 's32[1]{0}', space=sflag, size = 0x4, scoped, tag = 'scoped memory for tpu_custom_call.1']
    %12 = vsyncpa [#allocation3], 0
    // Predicated region
    $region2: #{tpu_custom_call.1} parent=1 // pred_check
      _
    $region3: #{tpu_custom_call.1} parent=1 // pred_check_branch
      %14 = sbr.rel (0) target = $region5
    $region4: #{tpu_custom_call.1} parent=1 // pred_region
      _
    $region5: #{tpu_custom_call.1} parent=1 // pred_fallthru
      _
    // Predicated region
    $region6: #{tpu_custom_call.1} parent=1 // pred_check
      _
    $region7: #{tpu_custom_call.1} parent=1 // pred_check_branch
      %16 = sbr.rel (0) target = $region9
    $region8: #{tpu_custom_call.1} parent=1 // pred_region
      _
    $region9: #{tpu_custom_call.1} parent=1 // pred_fallthru
      _
    // Predicated region
    $region10: #{tpu_custom_call.1} parent=1 // pred_check
      _
    $region11: #{tpu_custom_call.1} parent=1 // pred_check_branch
      %18 = sbr.rel (0) target = $region13
    $region12: #{tpu_custom_call.1} parent=1 // pred_region
      _
    $region13: #{tpu_custom_call.1} parent=1 // pred_fallthru
      _
    // Predicated region
    $region14: #{tpu_custom_call.1} parent=1 // pred_check
      _
    $region15: #{tpu_custom_call.1} parent=1 // pred_check_branch
      %20 = sbr.rel (0) target = $region17
    $region16: #{tpu_custom_call.1} parent=1 // pred_region
      _
    $region17: #{tpu_custom_call.1} parent=1 // pred_fallthru
      _
    // Predicated region
    $region18: #{tpu_custom_call.1} parent=1 // pred_check
      _
    $region19: #{tpu_custom_call.1} parent=1 // pred_check_branch
      %22 = sbr.rel (0) target = $region21
    $region20: #{tpu_custom_call.1} parent=1 // pred_region
      _
    $region21: #{tpu_custom_call.1} parent=1 // pred_fallthru
      _
    // Predicated region
    $region22: #{tpu_custom_call.1} parent=1 // pred_check
      _
    $region23: #{tpu_custom_call.1} parent=1 // pred_check_branch
      %24 = sbr.rel (0) target = $region25
    $region24: #{tpu_custom_call.1} parent=1 // pred_region
      _
    $region25: #{tpu_custom_call.1} parent=1 // pred_fallthru
      _
    // Predicated region
    $region26: #{tpu_custom_call.1} parent=1 // pred_check
      _
    $region27: #{tpu_custom_call.1} parent=1 // pred_check_branch
      %26 = sbr.rel (0) target = $region29
    $region28: #{tpu_custom_call.1} parent=1 // pred_region
      _
    $region29: #{tpu_custom_call.1} parent=1 // pred_fallthru
      _
    %v27 = vld [vmem:[%s0] sm:$0x3]
    %v28 = vld [vmem:[%s1] sm:$0xff]
    %v29 = vld [vmem:[%s1 + $0x8] sm:$0xff]
    %v30 = vld [vmem:[%s1 + $0x10] sm:$0xff]
    %v31 = vld [vmem:[%s1 + $0x18] sm:$0xff]
    %v32 = vld [vmem:[%s1 + $0x20] sm:$0xff]
    %v33 = vld [vmem:[%s1 + $0x28] sm:$0xff]
    %v34 = vld [vmem:[%s1 + $0x30] sm:$0xff]
    %v35 = vld [vmem:[%s1 + $0x38] sm:$0xff]
    %v36 = vld [vmem:[%s1 + $0x40] sm:$0xff]
    %v37 = vld [vmem:[%s1 + $0x48] sm:$0xff]
    %v38 = vld [vmem:[%s1 + $0x50] sm:$0xff]
    %v39 = vld [vmem:[%s1 + $0x58] sm:$0xff]
    %v40 = vld [vmem:[%s1 + $0x60] sm:$0xff]
    %v41 = vld [vmem:[%s1 + $0x68] sm:$0xff]
    %v42 = vld [vmem:[%s1 + $0x70] sm:$0xff]
    %v43 = vld [vmem:[%s1 + $0x78] sm:$0xff]
    %v44 = vand.u32 %v43, 4294901760
    %45 = vmatpush.msra.mxu0 %v44
    %v46 = vand.u32 %v42, 4294901760
    %47 = vmatpush.msra.mxu0 %v46
    %v48 = vand.u32 %v41, 4294901760
    %49 = vmatpush.msra.mxu0 %v48
    %v50 = vand.u32 %v40, 4294901760
    %51 = vmatpush.msra.mxu0 %v50
    %v52 = vand.u32 %v39, 4294901760
    %53 = vmatpush.msra.mxu0 %v52
    %v54 = vand.u32 %v38, 4294901760
    %55 = vmatpush.msra.mxu0 %v54
    %v56 = vand.u32 %v37, 4294901760
    %57 = vmatpush.msra.mxu0 %v56
    %v58 = vand.u32 %v36, 4294901760
    %59 = vmatpush.msra.mxu0 %v58
    %v60 = vand.u32 %v35, 4294901760
    %61 = vmatpush.msra.mxu0 %v60
    %v62 = vand.u32 %v34, 4294901760
    %63 = vmatpush.msra.mxu0 %v62
    %v64 = vand.u32 %v33, 4294901760
    %65 = vmatpush.msra.mxu0 %v64
    %v66 = vand.u32 %v32, 4294901760
    %67 = vmatpush.msra.mxu0 %v66
    %v68 = vand.u32 %v31, 4294901760
    %69 = vmatpush.msra.mxu0 %v68
    %v70 = vand.u32 %v30, 4294901760
    %71 = vmatpush.msra.mxu0 %v70
    %v72 = vand.u32 %v29, 4294901760
    %73 = vmatpush.msra.mxu0 %v72
    %v74 = vand.u32 %v28, 4294901760
    %75 = vmatpush.msra.mxu0 %v74
    %v76 = vand.u32 %v27, 4294901760
    %v77 = vsub.f32 %v27, %v76
    %v78 = vand.u32 %v77, 4294901760
    %v79 = vsub.f32 %v77, %v78
    %v80 = vand.u32 %v79, 4294901760
    %81 = vmatmul.f32.gmra.mxu0 %v80
    %v82 = vpop.f32.mrf.mxu0
    %v83 = vadd.f32 0.0, %v82
    %84 = vdwg.mxu0
    %v85 = vand.u32 %v43, 4294901760
    %v86 = vsub.f32 %v43, %v85
    %v87 = vand.u32 %v86, 4294901760
    %v88 = vsub.f32 %v86, %v87
    %v89 = vand.u32 %v88, 4294901760
    %90 = vmatpush.msra.mxu0 %v89
    %v91 = vand.u32 %v42, 4294901760
    %v92 = vsub.f32 %v42, %v91
    %v93 = vand.u32 %v92, 4294901760
    %v94 = vsub.f32 %v92, %v93
    %v95 = vand.u32 %v94, 4294901760
    %96 = vmatpush.msra.mxu0 %v95
    %v97 = vand.u32 %v41, 4294901760
    %v98 = vsub.f32 %v41, %v97
    %v99 = vand.u32 %v98, 4294901760
    %v100 = vsub.f32 %v98, %v99
    %v101 = vand.u32 %v100, 4294901760
    %102 = vmatpush.msra.mxu0 %v101
    %v103 = vand.u32 %v40, 4294901760
    %v104 = vsub.f32 %v40, %v103
    %v105 = vand.u32 %v104, 4294901760
    %v106 = vsub.f32 %v104, %v105
    %v107 = vand.u32 %v106, 4294901760
    %108 = vmatpush.msra.mxu0 %v107
    %v109 = vand.u32 %v39, 4294901760
    %v110 = vsub.f32 %v39, %v109
    %v111 = vand.u32 %v110, 4294901760
    %v112 = vsub.f32 %v110, %v111
    %v113 = vand.u32 %v112, 4294901760
    %114 = vmatpush.msra.mxu0 %v113
    %v115 = vand.u32 %v38, 4294901760
    %v116 = vsub.f32 %v38, %v115
    %v117 = vand.u32 %v116, 4294901760
    %v118 = vsub.f32 %v116, %v117
    %v119 = vand.u32 %v118, 4294901760
    %120 = vmatpush.msra.mxu0 %v119
    %v121 = vand.u32 %v37, 4294901760
    %v122 = vsub.f32 %v37, %v121
    %v123 = vand.u32 %v122, 4294901760
    %v124 = vsub.f32 %v122, %v123
    %v125 = vand.u32 %v124, 4294901760
    %126 = vmatpush.msra.mxu0 %v125
    %v127 = vand.u32 %v36, 4294901760
    %v128 = vsub.f32 %v36, %v127
    %v129 = vand.u32 %v128, 4294901760
    %v130 = vsub.f32 %v128, %v129
    %v131 = vand.u32 %v130, 4294901760
    %132 = vmatpush.msra.mxu0 %v131
    %v133 = vand.u32 %v35, 4294901760
    %v134 = vsub.f32 %v35, %v133
    %v135 = vand.u32 %v134, 4294901760
    %v136 = vsub.f32 %v134, %v135
    %v137 = vand.u32 %v136, 4294901760
    %138 = vmatpush.msra.mxu0 %v137
    %v139 = vand.u32 %v34, 4294901760
    %v140 = vsub.f32 %v34, %v139
    %v141 = vand.u32 %v140, 4294901760
    %v142 = vsub.f32 %v140, %v141
    %v143 = vand.u32 %v142, 4294901760
    %144 = vmatpush.msra.mxu0 %v143
    %v145 = vand.u32 %v33, 4294901760
    %v146 = vsub.f32 %v33, %v145
    %v147 = vand.u32 %v146, 4294901760
    %v148 = vsub.f32 %v146, %v147
    %v149 = vand.u32 %v148, 4294901760
    %150 = vmatpush.msra.mxu0 %v149
    %v151 = vand.u32 %v32, 4294901760
    %v152 = vsub.f32 %v32, %v151
    %v153 = vand.u32 %v152, 4294901760
    %v154 = vsub.f32 %v152, %v153
    %v155 = vand.u32 %v154, 4294901760
    %156 = vmatpush.msra.mxu0 %v155
    %v157 = vand.u32 %v31, 4294901760
    %v158 = vsub.f32 %v31, %v157
    %v159 = vand.u32 %v158, 4294901760
    %v160 = vsub.f32 %v158, %v159
    %v161 = vand.u32 %v160, 4294901760
    %162 = vmatpush.msra.mxu0 %v161
    %v163 = vand.u32 %v30, 4294901760
    %v164 = vsub.f32 %v30, %v163
    %v165 = vand.u32 %v164, 4294901760
    %v166 = vsub.f32 %v164, %v165
    %v167 = vand.u32 %v166, 4294901760
    %168 = vmatpush.msra.mxu0 %v167
    %v169 = vand.u32 %v29, 4294901760
    %v170 = vsub.f32 %v29, %v169
    %v171 = vand.u32 %v170, 4294901760
    %v172 = vsub.f32 %v170, %v171
    %v173 = vand.u32 %v172, 4294901760
    %174 = vmatpush.msra.mxu0 %v173
    %v175 = vand.u32 %v28, 4294901760
    %v176 = vsub.f32 %v28, %v175
    %v177 = vand.u32 %v176, 4294901760
    %v178 = vsub.f32 %v176, %v177
    %v179 = vand.u32 %v178, 4294901760
    %180 = vmatpush.msra.mxu0 %v179
    %v181 = vand.u32 %v27, 4294901760
    %182 = vmatmul.f32.gmra.mxu0 %v181
    %v183 = vpop.f32.mrf.mxu0
    %v184 = vadd.f32 %v83, %v183
    %185 = vdwg.mxu0
    %v186 = vand.u32 %v43, 4294901760
    %v187 = vsub.f32 %v43, %v186
    %188 = vmatpush.msra.mxu0 %v187
    %v189 = vand.u32 %v42, 4294901760
    %v190 = vsub.f32 %v42, %v189
    %191 = vmatpush.msra.mxu0 %v190
    %v192 = vand.u32 %v41, 4294901760
    %v193 = vsub.f32 %v41, %v192
    %194 = vmatpush.msra.mxu0 %v193
    %v195 = vand.u32 %v40, 4294901760
    %v196 = vsub.f32 %v40, %v195
    %197 = vmatpush.msra.mxu0 %v196
    %v198 = vand.u32 %v39, 4294901760
    %v199 = vsub.f32 %v39, %v198
    %200 = vmatpush.msra.mxu0 %v199
    %v201 = vand.u32 %v38, 4294901760
    %v202 = vsub.f32 %v38, %v201
    %203 = vmatpush.msra.mxu0 %v202
    %v204 = vand.u32 %v37, 4294901760
    %v205 = vsub.f32 %v37, %v204
    %206 = vmatpush.msra.mxu0 %v205
    %v207 = vand.u32 %v36, 4294901760
    %v208 = vsub.f32 %v36, %v207
    %209 = vmatpush.msra.mxu0 %v208
    %v210 = vand.u32 %v35, 4294901760
    %v211 = vsub.f32 %v35, %v210
    %212 = vmatpush.msra.mxu0 %v211
    %v213 = vand.u32 %v34, 4294901760
    %v214 = vsub.f32 %v34, %v213
    %215 = vmatpush.msra.mxu0 %v214
    %v216 = vand.u32 %v33, 4294901760
    %v217 = vsub.f32 %v33, %v216
    %218 = vmatpush.msra.mxu0 %v217
    %v219 = vand.u32 %v32, 4294901760
    %v220 = vsub.f32 %v32, %v219
    %221 = vmatpush.msra.mxu0 %v220
    %v222 = vand.u32 %v31, 4294901760
    %v223 = vsub.f32 %v31, %v222
    %224 = vmatpush.msra.mxu0 %v223
    %v225 = vand.u32 %v30, 4294901760
    %v226 = vsub.f32 %v30, %v225
    %227 = vmatpush.msra.mxu0 %v226
    %v228 = vand.u32 %v29, 4294901760
    %v229 = vsub.f32 %v29, %v228
    %230 = vmatpush.msra.mxu0 %v229
    %v231 = vand.u32 %v28, 4294901760
    %v232 = vsub.f32 %v28, %v231
    %233 = vmatpush.msra.mxu0 %v232
    %v234 = vand.u32 %v27, 4294901760
    %v235 = vsub.f32 %v27, %v234
    %236 = vmatmul.f32.gmra.mxu0 %v235
    %v237 = vpop.f32.mrf.mxu0
    %v238 = vadd.f32 %v184, %v237
    %239 = vdwg.mxu0
    %v240 = vand.u32 %v43, 4294901760
    %241 = vmatpush.msra.mxu0 %v240
    %v242 = vand.u32 %v42, 4294901760
    %243 = vmatpush.msra.mxu0 %v242
    %v244 = vand.u32 %v41, 4294901760
    %245 = vmatpush.msra.mxu0 %v244
    %v246 = vand.u32 %v40, 4294901760
    %247 = vmatpush.msra.mxu0 %v246
    %v248 = vand.u32 %v39, 4294901760
    %249 = vmatpush.msra.mxu0 %v248
    %v250 = vand.u32 %v38, 4294901760
    %251 = vmatpush.msra.mxu0 %v250
    %v252 = vand.u32 %v37, 4294901760
    %253 = vmatpush.msra.mxu0 %v252
    %v254 = vand.u32 %v36, 4294901760
    %255 = vmatpush.msra.mxu0 %v254
    %v256 = vand.u32 %v35, 4294901760
    %257 = vmatpush.msra.mxu0 %v256
    %v258 = vand.u32 %v34, 4294901760
    %259 = vmatpush.msra.mxu0 %v258
    %v260 = vand.u32 %v33, 4294901760
    %261 = vmatpush.msra.mxu0 %v260
    %v262 = vand.u32 %v32, 4294901760
    %263 = vmatpush.msra.mxu0 %v262
    %v264 = vand.u32 %v31, 4294901760
    %265 = vmatpush.msra.mxu0 %v264
    %v266 = vand.u32 %v30, 4294901760
    %267 = vmatpush.msra.mxu0 %v266
    %v268 = vand.u32 %v29, 4294901760
    %269 = vmatpush.msra.mxu0 %v268
    %v270 = vand.u32 %v28, 4294901760
    %271 = vmatpush.msra.mxu0 %v270
    %v272 = vand.u32 %v27, 4294901760
    %v273 = vsub.f32 %v27, %v272
    %v274 = vand.u32 %v273, 4294901760
    %275 = vmatmul.f32.gmra.mxu0 %v274
    %v276 = vpop.f32.mrf.mxu0
    %v277 = vadd.f32 %v238, %v276
    %278 = vdwg.mxu0
    %v279 = vand.u32 %v43, 4294901760
    %v280 = vsub.f32 %v43, %v279
    %v281 = vand.u32 %v280, 4294901760
    %282 = vmatpush.msra.mxu0 %v281
    %v283 = vand.u32 %v42, 4294901760
    %v284 = vsub.f32 %v42, %v283
    %v285 = vand.u32 %v284, 4294901760
    %286 = vmatpush.msra.mxu0 %v285
    %v287 = vand.u32 %v41, 4294901760
    %v288 = vsub.f32 %v41, %v287
    %v289 = vand.u32 %v288, 4294901760
    %290 = vmatpush.msra.mxu0 %v289
    %v291 = vand.u32 %v40, 4294901760
    %v292 = vsub.f32 %v40, %v291
    %v293 = vand.u32 %v292, 4294901760
    %294 = vmatpush.msra.mxu0 %v293
    %v295 = vand.u32 %v39, 4294901760
    %v296 = vsub.f32 %v39, %v295
    %v297 = vand.u32 %v296, 4294901760
    %298 = vmatpush.msra.mxu0 %v297
    %v299 = vand.u32 %v38, 4294901760
    %v300 = vsub.f32 %v38, %v299
    %v301 = vand.u32 %v300, 4294901760
    %302 = vmatpush.msra.mxu0 %v301
    %v303 = vand.u32 %v37, 4294901760
    %v304 = vsub.f32 %v37, %v303
    %v305 = vand.u32 %v304, 4294901760
    %306 = vmatpush.msra.mxu0 %v305
    %v307 = vand.u32 %v36, 4294901760
    %v308 = vsub.f32 %v36, %v307
    %v309 = vand.u32 %v308, 4294901760
    %310 = vmatpush.msra.mxu0 %v309
    %v311 = vand.u32 %v35, 4294901760
    %v312 = vsub.f32 %v35, %v311
    %v313 = vand.u32 %v312, 4294901760
    %314 = vmatpush.msra.mxu0 %v313
    %v315 = vand.u32 %v34, 4294901760
    %v316 = vsub.f32 %v34, %v315
    %v317 = vand.u32 %v316, 4294901760
    %318 = vmatpush.msra.mxu0 %v317
    %v319 = vand.u32 %v33, 4294901760
    %v320 = vsub.f32 %v33, %v319
    %v321 = vand.u32 %v320, 4294901760
    %322 = vmatpush.msra.mxu0 %v321
    %v323 = vand.u32 %v32, 4294901760
    %v324 = vsub.f32 %v32, %v323
    %v325 = vand.u32 %v324, 4294901760
    %326 = vmatpush.msra.mxu0 %v325
    %v327 = vand.u32 %v31, 4294901760
    %v328 = vsub.f32 %v31, %v327
    %v329 = vand.u32 %v328, 4294901760
    %330 = vmatpush.msra.mxu0 %v329
    %v331 = vand.u32 %v30, 4294901760
    %v332 = vsub.f32 %v30, %v331
    %v333 = vand.u32 %v332, 4294901760
    %334 = vmatpush.msra.mxu0 %v333
    %v335 = vand.u32 %v29, 4294901760
    %v336 = vsub.f32 %v29, %v335
    %v337 = vand.u32 %v336, 4294901760
    %338 = vmatpush.msra.mxu0 %v337
    %v339 = vand.u32 %v28, 4294901760
    %v340 = vsub.f32 %v28, %v339
    %v341 = vand.u32 %v340, 4294901760
    %342 = vmatpush.msra.mxu0 %v341
    %v343 = vand.u32 %v27, 4294901760
    %344 = vmatmul.f32.gmra.mxu0 %v343
    %v345 = vpop.f32.mrf.mxu0
    %v346 = vadd.f32 %v277, %v345
    %347 = vdwg.mxu0
    %v348 = vand.u32 %v43, 4294901760
    %349 = vmatpush.msra.mxu0 %v348
    %v350 = vand.u32 %v42, 4294901760
    %351 = vmatpush.msra.mxu0 %v350
    %v352 = vand.u32 %v41, 4294901760
    %353 = vmatpush.msra.mxu0 %v352
    %v354 = vand.u32 %v40, 4294901760
    %355 = vmatpush.msra.mxu0 %v354
    %v356 = vand.u32 %v39, 4294901760
    %357 = vmatpush.msra.mxu0 %v356
    %v358 = vand.u32 %v38, 4294901760
    %359 = vmatpush.msra.mxu0 %v358
    %v360 = vand.u32 %v37, 4294901760
    %361 = vmatpush.msra.mxu0 %v360
    %v362 = vand.u32 %v36, 4294901760
    %363 = vmatpush.msra.mxu0 %v362
    %v364 = vand.u32 %v35, 4294901760
    %365 = vmatpush.msra.mxu0 %v364
    %v366 = vand.u32 %v34, 4294901760
    %367 = vmatpush.msra.mxu0 %v366
    %v368 = vand.u32 %v33, 4294901760
    %369 = vmatpush.msra.mxu0 %v368
    %v370 = vand.u32 %v32, 4294901760
    %371 = vmatpush.msra.mxu0 %v370
    %v372 = vand.u32 %v31, 4294901760
    %373 = vmatpush.msra.mxu0 %v372
    %v374 = vand.u32 %v30, 4294901760
    %375 = vmatpush.msra.mxu0 %v374
    %v376 = vand.u32 %v29, 4294901760
    %377 = vmatpush.msra.mxu0 %v376
    %v378 = vand.u32 %v28, 4294901760
    %379 = vmatpush.msra.mxu0 %v378
    %v380 = vand.u32 %v27, 4294901760
    %381 = vmatmul.f32.gmra.mxu0 %v380
    %v382 = vpop.f32.mrf.mxu0
    %v383 = vadd.f32 %v346, %v382
    %384 = vdwg.mxu0
    %v385 = vld [vmem:[%s2] sm:$0xff]
    %v386 = vld [vmem:[%s3] sm:$0x1]
    %v388 = vperm.slane %v386, 0
    %vm390 = vcmask 64512
    %v392 = vsel %vm390, %v383, 0
    %394 = vmatpush.msra.mxu0 0.0
    %395 = vmatpush.msra.mxu0 0.0
    %396 = vmatpush.msra.mxu0 0.0
    %397 = vmatpush.msra.mxu0 0.0
    %398 = vmatpush.msra.mxu0 0.0
    %399 = vmatpush.msra.mxu0 0.0
    %400 = vmatpush.msra.mxu0 0.0
    %401 = vmatpush.msra.mxu0 0.0
    %402 = vmatpush.msra.mxu0 0.0
    %403 = vmatpush.msra.mxu0 0.0
    %404 = vmatpush.msra.mxu0 0.0
    %405 = vmatpush.msra.mxu0 0.0
    %406 = vmatpush.msra.mxu0 0.0
    %407 = vmatpush.msra.mxu0 0.0
    %408 = vmatpush.msra.mxu0 0.0
    %v409 = vand.u32 %v385, 4294901760
    %410 = vmatpush.msra.mxu0 %v409
    %v411 = vand.u32 %v392, 4294901760
    %v412 = vsub.f32 %v392, %v411
    %v413 = vand.u32 %v412, 4294901760
    %v414 = vsub.f32 %v412, %v413
    %v415 = vand.u32 %v414, 4294901760
    %416 = vmatmul.f32.gmra.mxu0 %v415
    %v417 = vpop.f32.mrf.mxu0
    %v418 = vadd.f32 %v388, %v417
    %419 = vdwg.mxu0
    %420 = vmatpush.msra.mxu0 0.0
    %421 = vmatpush.msra.mxu0 0.0
    %422 = vmatpush.msra.mxu0 0.0
    %423 = vmatpush.msra.mxu0 0.0
    %424 = vmatpush.msra.mxu0 0.0
    %425 = vmatpush.msra.mxu0 0.0
    %426 = vmatpush.msra.mxu0 0.0
    %427 = vmatpush.msra.mxu0 0.0
    %428 = vmatpush.msra.mxu0 0.0
    %429 = vmatpush.msra.mxu0 0.0
    %430 = vmatpush.msra.mxu0 0.0
    %431 = vmatpush.msra.mxu0 0.0
    %432 = vmatpush.msra.mxu0 0.0
    %433 = vmatpush.msra.mxu0 0.0
    %434 = vmatpush.msra.mxu0 0.0
    %v435 = vand.u32 %v385, 4294901760
    %v436 = vsub.f32 %v385, %v435
    %v437 = vand.u32 %v436, 4294901760
    %v438 = vsub.f32 %v436, %v437
    %v439 = vand.u32 %v438, 4294901760
    %440 = vmatpush.msra.mxu0 %v439
    %v441 = vand.u32 %v392, 4294901760
    %442 = vmatmul.f32.gmra.mxu0 %v441
    %v443 = vpop.f32.mrf.mxu0
    %v444 = vadd.f32 %v418, %v443
    %445 = vdwg.mxu0
    %446 = vmatpush.msra.mxu0 0.0
    %447 = vmatpush.msra.mxu0 0.0
    %448 = vmatpush.msra.mxu0 0.0
    %449 = vmatpush.msra.mxu0 0.0
    %450 = vmatpush.msra.mxu0 0.0
    %451 = vmatpush.msra.mxu0 0.0
    %452 = vmatpush.msra.mxu0 0.0
    %453 = vmatpush.msra.mxu0 0.0
    %454 = vmatpush.msra.mxu0 0.0
    %455 = vmatpush.msra.mxu0 0.0
    %456 = vmatpush.msra.mxu0 0.0
    %457 = vmatpush.msra.mxu0 0.0
    %458 = vmatpush.msra.mxu0 0.0
    %459 = vmatpush.msra.mxu0 0.0
    %460 = vmatpush.msra.mxu0 0.0
    %v461 = vand.u32 %v385, 4294901760
    %v462 = vsub.f32 %v385, %v461
    %463 = vmatpush.msra.mxu0 %v462
    %v464 = vand.u32 %v392, 4294901760
    %v465 = vsub.f32 %v392, %v464
    %466 = vmatmul.f32.gmra.mxu0 %v465
    %v467 = vpop.f32.mrf.mxu0
    %v468 = vadd.f32 %v444, %v467
    %469 = vdwg.mxu0
    %470 = vmatpush.msra.mxu0 0.0
    %471 = vmatpush.msra.mxu0 0.0
    %472 = vmatpush.msra.mxu0 0.0
    %473 = vmatpush.msra.mxu0 0.0
    %474 = vmatpush.msra.mxu0 0.0
    %475 = vmatpush.msra.mxu0 0.0
    %476 = vmatpush.msra.mxu0 0.0
    %477 = vmatpush.msra.mxu0 0.0
    %478 = vmatpush.msra.mxu0 0.0
    %479 = vmatpush.msra.mxu0 0.0
    %480 = vmatpush.msra.mxu0 0.0
    %481 = vmatpush.msra.mxu0 0.0
    %482 = vmatpush.msra.mxu0 0.0
    %483 = vmatpush.msra.mxu0 0.0
    %484 = vmatpush.msra.mxu0 0.0
    %v485 = vand.u32 %v385, 4294901760
    %486 = vmatpush.msra.mxu0 %v485
    %v487 = vand.u32 %v392, 4294901760
    %v488 = vsub.f32 %v392, %v487
    %v489 = vand.u32 %v488, 4294901760
    %490 = vmatmul.f32.gmra.mxu0 %v489
    %v491 = vpop.f32.mrf.mxu0
    %v492 = vadd.f32 %v468, %v491
    %493 = vdwg.mxu0
    %494 = vmatpush.msra.mxu0 0.0
    %495 = vmatpush.msra.mxu0 0.0
    %496 = vmatpush.msra.mxu0 0.0
    %497 = vmatpush.msra.mxu0 0.0
    %498 = vmatpush.msra.mxu0 0.0
    %499 = vmatpush.msra.mxu0 0.0
    %500 = vmatpush.msra.mxu0 0.0
    %501 = vmatpush.msra.mxu0 0.0
    %502 = vmatpush.msra.mxu0 0.0
    %503 = vmatpush.msra.mxu0 0.0
    %504 = vmatpush.msra.mxu0 0.0
    %505 = vmatpush.msra.mxu0 0.0
    %506 = vmatpush.msra.mxu0 0.0
    %507 = vmatpush.msra.mxu0 0.0
    %508 = vmatpush.msra.mxu0 0.0
    %v509 = vand.u32 %v385, 4294901760
    %v510 = vsub.f32 %v385, %v509
    %v511 = vand.u32 %v510, 4294901760
    %512 = vmatpush.msra.mxu0 %v511
    %v513 = vand.u32 %v392, 4294901760
    %514 = vmatmul.f32.gmra.mxu0 %v513
    %v515 = vpop.f32.mrf.mxu0
    %v516 = vadd.f32 %v492, %v515
    %517 = vdwg.mxu0
    %518 = vmatpush.msra.mxu0 0.0
    %519 = vmatpush.msra.mxu0 0.0
    %520 = vmatpush.msra.mxu0 0.0
    %521 = vmatpush.msra.mxu0 0.0
    %522 = vmatpush.msra.mxu0 0.0
    %523 = vmatpush.msra.mxu0 0.0
    %524 = vmatpush.msra.mxu0 0.0
    %525 = vmatpush.msra.mxu0 0.0
    %526 = vmatpush.msra.mxu0 0.0
    %527 = vmatpush.msra.mxu0 0.0
    %528 = vmatpush.msra.mxu0 0.0
    %529 = vmatpush.msra.mxu0 0.0
    %530 = vmatpush.msra.mxu0 0.0
    %531 = vmatpush.msra.mxu0 0.0
    %532 = vmatpush.msra.mxu0 0.0
    %v533 = vand.u32 %v385, 4294901760
    %534 = vmatpush.msra.mxu0 %v533
    %v535 = vand.u32 %v392, 4294901760
    %536 = vmatmul.f32.gmra.mxu0 %v535
    %v537 = vpop.f32.mrf.mxu0
    %v538 = vadd.f32 %v516, %v537
    %539 = vdwg.mxu0
    %v540 = vmax.f32 %v538, 0.0
    %v541 = vld [vmem:[%s4] sm:$0xf]
    %v542 = vld [vmem:[%s5] sm:$0x1]
    %v544 = vperm.slane %v542, 0
    %vm546 = vcmask 31744
    %v548 = vsel %vm546, %v540, 0
    %vm550 = vcmask 1043456
    %v552 = vsel %vm550, %v541, 0
    %554 = vmatpush.msra.mxu0 0.0
    %555 = vmatpush.msra.mxu0 0.0
    %556 = vmatpush.msra.mxu0 0.0
    %557 = vmatpush.msra.mxu0 0.0
    %558 = vmatpush.msra.mxu0 0.0
    %559 = vmatpush.msra.mxu0 0.0
    %560 = vmatpush.msra.mxu0 0.0
    %561 = vmatpush.msra.mxu0 0.0
    %562 = vmatpush.msra.mxu0 0.0
    %563 = vmatpush.msra.mxu0 0.0
    %564 = vmatpush.msra.mxu0 0.0
    %565 = vmatpush.msra.mxu0 0.0
    %566 = vmatpush.msra.mxu0 0.0
    %567 = vmatpush.msra.mxu0 0.0
    %568 = vmatpush.msra.mxu0 0.0
    %v569 = vand.u32 %v552, 4294901760
    %570 = vmatpush.msra.mxu0 %v569
    %v571 = vand.u32 %v548, 4294901760
    %v572 = vsub.f32 %v548, %v571
    %v573 = vand.u32 %v572, 4294901760
    %v574 = vsub.f32 %v572, %v573
    %v575 = vand.u32 %v574, 4294901760
    %576 = vmatmul.f32.gmra.mxu0 %v575
    %v577 = vpop.f32.mrf.mxu0
    %v578 = vadd.f32 %v544, %v577
    %579 = vdwg.mxu0
    %580 = vmatpush.msra.mxu0 0.0
    %581 = vmatpush.msra.mxu0 0.0
    %582 = vmatpush.msra.mxu0 0.0
    %583 = vmatpush.msra.mxu0 0.0
    %584 = vmatpush.msra.mxu0 0.0
    %585 = vmatpush.msra.mxu0 0.0
    %586 = vmatpush.msra.mxu0 0.0
    %587 = vmatpush.msra.mxu0 0.0
    %588 = vmatpush.msra.mxu0 0.0
    %589 = vmatpush.msra.mxu0 0.0
    %590 = vmatpush.msra.mxu0 0.0
    %591 = vmatpush.msra.mxu0 0.0
    %592 = vmatpush.msra.mxu0 0.0
    %593 = vmatpush.msra.mxu0 0.0
    %594 = vmatpush.msra.mxu0 0.0
    %v595 = vand.u32 %v552, 4294901760
    %v596 = vsub.f32 %v552, %v595
    %v597 = vand.u32 %v596, 4294901760
    %v598 = vsub.f32 %v596, %v597
    %v599 = vand.u32 %v598, 4294901760
    %600 = vmatpush.msra.mxu0 %v599
    %v601 = vand.u32 %v548, 4294901760
    %602 = vmatmul.f32.gmra.mxu0 %v601
    %v603 = vpop.f32.mrf.mxu0
    %v604 = vadd.f32 %v578, %v603
    %605 = vdwg.mxu0
    %606 = vmatpush.msra.mxu0 0.0
    %607 = vmatpush.msra.mxu0 0.0
    %608 = vmatpush.msra.mxu0 0.0
    %609 = vmatpush.msra.mxu0 0.0
    %610 = vmatpush.msra.mxu0 0.0
    %611 = vmatpush.msra.mxu0 0.0
    %612 = vmatpush.msra.mxu0 0.0
    %613 = vmatpush.msra.mxu0 0.0
    %614 = vmatpush.msra.mxu0 0.0
    %615 = vmatpush.msra.mxu0 0.0
    %616 = vmatpush.msra.mxu0 0.0
    %617 = vmatpush.msra.mxu0 0.0
    %618 = vmatpush.msra.mxu0 0.0
    %619 = vmatpush.msra.mxu0 0.0
    %620 = vmatpush.msra.mxu0 0.0
    %v621 = vand.u32 %v552, 4294901760
    %v622 = vsub.f32 %v552, %v621
    %623 = vmatpush.msra.mxu0 %v622
    %v624 = vand.u32 %v548, 4294901760
    %v625 = vsub.f32 %v548, %v624
    %626 = vmatmul.f32.gmra.mxu0 %v625
    %v627 = vpop.f32.mrf.mxu0
    %v628 = vadd.f32 %v604, %v627
    %629 = vdwg.mxu0
    %630 = vmatpush.msra.mxu0 0.0
    %631 = vmatpush.msra.mxu0 0.0
    %632 = vmatpush.msra.mxu0 0.0
    %633 = vmatpush.msra.mxu0 0.0
    %634 = vmatpush.msra.mxu0 0.0
    %635 = vmatpush.msra.mxu0 0.0
    %636 = vmatpush.msra.mxu0 0.0
    %637 = vmatpush.msra.mxu0 0.0
    %638 = vmatpush.msra.mxu0 0.0
    %639 = vmatpush.msra.mxu0 0.0
    %640 = vmatpush.msra.mxu0 0.0
    %641 = vmatpush.msra.mxu0 0.0
    %642 = vmatpush.msra.mxu0 0.0
    %643 = vmatpush.msra.mxu0 0.0
    %644 = vmatpush.msra.mxu0 0.0
    %v645 = vand.u32 %v552, 4294901760
    %646 = vmatpush.msra.mxu0 %v645
    %v647 = vand.u32 %v548, 4294901760
    %v648 = vsub.f32 %v548, %v647
    %v649 = vand.u32 %v648, 4294901760
    %650 = vmatmul.f32.gmra.mxu0 %v649
    %v651 = vpop.f32.mrf.mxu0
    %v652 = vadd.f32 %v628, %v651
    %653 = vdwg.mxu0
    %654 = vmatpush.msra.mxu0 0.0
    %655 = vmatpush.msra.mxu0 0.0
    %656 = vmatpush.msra.mxu0 0.0
    %657 = vmatpush.msra.mxu0 0.0
    %658 = vmatpush.msra.mxu0 0.0
    %659 = vmatpush.msra.mxu0 0.0
    %660 = vmatpush.msra.mxu0 0.0
    %661 = vmatpush.msra.mxu0 0.0
    %662 = vmatpush.msra.mxu0 0.0
    %663 = vmatpush.msra.mxu0 0.0
    %664 = vmatpush.msra.mxu0 0.0
    %665 = vmatpush.msra.mxu0 0.0
    %666 = vmatpush.msra.mxu0 0.0
    %667 = vmatpush.msra.mxu0 0.0
    %668 = vmatpush.msra.mxu0 0.0
    %v669 = vand.u32 %v552, 4294901760
    %v670 = vsub.f32 %v552, %v669
    %v671 = vand.u32 %v670, 4294901760
    %672 = vmatpush.msra.mxu0 %v671
    %v673 = vand.u32 %v548, 4294901760
    %674 = vmatmul.f32.gmra.mxu0 %v673
    %v675 = vpop.f32.mrf.mxu0
    %v676 = vadd.f32 %v652, %v675
    %677 = vdwg.mxu0
    %678 = vmatpush.msra.mxu0 0.0
    %679 = vmatpush.msra.mxu0 0.0
    %680 = vmatpush.msra.mxu0 0.0
    %681 = vmatpush.msra.mxu0 0.0
    %682 = vmatpush.msra.mxu0 0.0
    %683 = vmatpush.msra.mxu0 0.0
    %684 = vmatpush.msra.mxu0 0.0
    %685 = vmatpush.msra.mxu0 0.0
    %686 = vmatpush.msra.mxu0 0.0
    %687 = vmatpush.msra.mxu0 0.0
    %688 = vmatpush.msra.mxu0 0.0
    %689 = vmatpush.msra.mxu0 0.0
    %690 = vmatpush.msra.mxu0 0.0
    %691 = vmatpush.msra.mxu0 0.0
    %692 = vmatpush.msra.mxu0 0.0
    %v693 = vand.u32 %v552, 4294901760
    %694 = vmatpush.msra.mxu0 %v693
    %v695 = vand.u32 %v548, 4294901760
    %696 = vmatmul.f32.gmra.mxu0 %v695
    %v697 = vpop.f32.mrf.mxu0
    %v698 = vadd.f32 %v676, %v697
    %699 = vdwg.mxu0
    %v700 = vxor.u32 %v698, 2147483648
    %v701 = vmul.f32 %v700, 1.442695
    %v702 = vpow.pop %v701
    %v703 = vadd.f32 %v702, 1.0
    %v704 = vrcp.pop %v703
    %v705 = vmul.f32 %v703, %v704
    %v706 = vsub.f32 1.0, %v705
    %v707 = vmul.f32 %v704, %v706
    %v708 = vadd.f32 %v704, %v707
    %vm709 = vweird.f32 %v703
    %vm710 = vweird.f32 %v704
    %vm711 = vmor %vm709, %vm710
    %v712 = vsel %vm711, %v704, %v708
    %v713 = vand.u32 2147483647, %v703
    %vm714 = vcmp.eq.f32.partialorder %v713, 8.507059e+37
    %v715 = vand.u32 %v703, 2147483648
    %v716 = vor.u32 1.1754944e-38, %v715
    %v717 = vsel %vm714, %v716, %v712
    %v718 = vmul.f32 1.0, %v717
    %v719 = vadd.f32 %v718, 1.0
    %v720 = vld [vmem:[%s6] sm:$0xff]
    %v722 = vsel %vm390, %v719, 0
    %724 = vmatpush.msra.mxu0 0.0
    %725 = vmatpush.msra.mxu0 0.0
    %726 = vmatpush.msra.mxu0 0.0
    %727 = vmatpush.msra.mxu0 0.0
    %728 = vmatpush.msra.mxu0 0.0
    %729 = vmatpush.msra.mxu0 0.0
    %730 = vmatpush.msra.mxu0 0.0
    %731 = vmatpush.msra.mxu0 0.0
    %732 = vmatpush.msra.mxu0 0.0
    %733 = vmatpush.msra.mxu0 0.0
    %734 = vmatpush.msra.mxu0 0.0
    %735 = vmatpush.msra.mxu0 0.0
    %736 = vmatpush.msra.mxu0 0.0
    %737 = vmatpush.msra.mxu0 0.0
    %738 = vmatpush.msra.mxu0 0.0
    %v739 = vand.u32 %v720, 4294901760
    %740 = vmatpush.msra.mxu0 %v739
    %v741 = vand.u32 %v722, 4294901760
    %v742 = vsub.f32 %v722, %v741
    %v743 = vand.u32 %v742, 4294901760
    %v744 = vsub.f32 %v742, %v743
    %v745 = vand.u32 %v744, 4294901760
    %746 = vmatmul.f32.gmra.mxu0 %v745
    %v747 = vpop.f32.mrf.mxu0
    %v748 = vadd.f32 0.0, %v747
    %749 = vdwg.mxu0
    %750 = vmatpush.msra.mxu0 0.0
    %751 = vmatpush.msra.mxu0 0.0
    %752 = vmatpush.msra.mxu0 0.0
    %753 = vmatpush.msra.mxu0 0.0
    %754 = vmatpush.msra.mxu0 0.0
    %755 = vmatpush.msra.mxu0 0.0
    %756 = vmatpush.msra.mxu0 0.0
    %757 = vmatpush.msra.mxu0 0.0
    %758 = vmatpush.msra.mxu0 0.0
    %759 = vmatpush.msra.mxu0 0.0
    %760 = vmatpush.msra.mxu0 0.0
    %761 = vmatpush.msra.mxu0 0.0
    %762 = vmatpush.msra.mxu0 0.0
    %763 = vmatpush.msra.mxu0 0.0
    %764 = vmatpush.msra.mxu0 0.0
    %v765 = vand.u32 %v720, 4294901760
    %v766 = vsub.f32 %v720, %v765
    %v767 = vand.u32 %v766, 4294901760
    %v768 = vsub.f32 %v766, %v767
    %v769 = vand.u32 %v768, 4294901760
    %770 = vmatpush.msra.mxu0 %v769
    %v771 = vand.u32 %v722, 4294901760
    %772 = vmatmul.f32.gmra.mxu0 %v771
    %v773 = vpop.f32.mrf.mxu0
    %v774 = vadd.f32 %v748, %v773
    %775 = vdwg.mxu0
    %776 = vmatpush.msra.mxu0 0.0
    %777 = vmatpush.msra.mxu0 0.0
    %778 = vmatpush.msra.mxu0 0.0
    %779 = vmatpush.msra.mxu0 0.0
    %780 = vmatpush.msra.mxu0 0.0
    %781 = vmatpush.msra.mxu0 0.0
    %782 = vmatpush.msra.mxu0 0.0
    %783 = vmatpush.msra.mxu0 0.0
    %784 = vmatpush.msra.mxu0 0.0
    %785 = vmatpush.msra.mxu0 0.0
    %786 = vmatpush.msra.mxu0 0.0
    %787 = vmatpush.msra.mxu0 0.0
    %788 = vmatpush.msra.mxu0 0.0
    %789 = vmatpush.msra.mxu0 0.0
    %790 = vmatpush.msra.mxu0 0.0
    %v791 = vand.u32 %v720, 4294901760
    %v792 = vsub.f32 %v720, %v791
    %793 = vmatpush.msra.mxu0 %v792
    %v794 = vand.u32 %v722, 4294901760
    %v795 = vsub.f32 %v722, %v794
    %796 = vmatmul.f32.gmra.mxu0 %v795
    %v797 = vpop.f32.mrf.mxu0
    %v798 = vadd.f32 %v774, %v797
    %799 = vdwg.mxu0
    %800 = vmatpush.msra.mxu0 0.0
    %801 = vmatpush.msra.mxu0 0.0
    %802 = vmatpush.msra.mxu0 0.0
    %803 = vmatpush.msra.mxu0 0.0
    %804 = vmatpush.msra.mxu0 0.0
    %805 = vmatpush.msra.mxu0 0.0
    %806 = vmatpush.msra.mxu0 0.0
    %807 = vmatpush.msra.mxu0 0.0
    %808 = vmatpush.msra.mxu0 0.0
    %809 = vmatpush.msra.mxu0 0.0
    %810 = vmatpush.msra.mxu0 0.0
    %811 = vmatpush.msra.mxu0 0.0
    %812 = vmatpush.msra.mxu0 0.0
    %813 = vmatpush.msra.mxu0 0.0
    %814 = vmatpush.msra.mxu0 0.0
    %v815 = vand.u32 %v720, 4294901760
    %816 = vmatpush.msra.mxu0 %v815
    %v817 = vand.u32 %v722, 4294901760
    %v818 = vsub.f32 %v722, %v817
    %v819 = vand.u32 %v818, 4294901760
    %820 = vmatmul.f32.gmra.mxu0 %v819
    %v821 = vpop.f32.mrf.mxu0
    %v822 = vadd.f32 %v798, %v821
    %823 = vdwg.mxu0
    %824 = vmatpush.msra.mxu0 0.0
    %825 = vmatpush.msra.mxu0 0.0
    %826 = vmatpush.msra.mxu0 0.0
    %827 = vmatpush.msra.mxu0 0.0
    %828 = vmatpush.msra.mxu0 0.0
    %829 = vmatpush.msra.mxu0 0.0
    %830 = vmatpush.msra.mxu0 0.0
    %831 = vmatpush.msra.mxu0 0.0
    %832 = vmatpush.msra.mxu0 0.0
    %833 = vmatpush.msra.mxu0 0.0
    %834 = vmatpush.msra.mxu0 0.0
    %835 = vmatpush.msra.mxu0 0.0
    %836 = vmatpush.msra.mxu0 0.0
    %837 = vmatpush.msra.mxu0 0.0
    %838 = vmatpush.msra.mxu0 0.0
    %v839 = vand.u32 %v720, 4294901760
    %v840 = vsub.f32 %v720, %v839
    %v841 = vand.u32 %v840, 4294901760
    %842 = vmatpush.msra.mxu0 %v841
    %v843 = vand.u32 %v722, 4294901760
    %844 = vmatmul.f32.gmra.mxu0 %v843
    %v845 = vpop.f32.mrf.mxu0
    %v846 = vadd.f32 %v822, %v845
    %847 = vdwg.mxu0
    %848 = vmatpush.msra.mxu0 0.0
    %849 = vmatpush.msra.mxu0 0.0
    %850 = vmatpush.msra.mxu0 0.0
    %851 = vmatpush.msra.mxu0 0.0
    %852 = vmatpush.msra.mxu0 0.0
    %853 = vmatpush.msra.mxu0 0.0
    %854 = vmatpush.msra.mxu0 0.0
    %855 = vmatpush.msra.mxu0 0.0
    %856 = vmatpush.msra.mxu0 0.0
    %857 = vmatpush.msra.mxu0 0.0
    %858 = vmatpush.msra.mxu0 0.0
    %859 = vmatpush.msra.mxu0 0.0
    %860 = vmatpush.msra.mxu0 0.0
    %861 = vmatpush.msra.mxu0 0.0
    %862 = vmatpush.msra.mxu0 0.0
    %v863 = vand.u32 %v720, 4294901760
    %864 = vmatpush.msra.mxu0 %v863
    %v865 = vand.u32 %v722, 4294901760
    %866 = vmatmul.f32.gmra.mxu0 %v865
    %v867 = vpop.f32.mrf.mxu0
    %v868 = vadd.f32 %v846, %v867
    %869 = vdwg.mxu0
    %v870 = vmul.f32 %v27, %v868
    %871 = vst [vmem:[#allocation2] sm:$0x3] %v870
    // Predicated region
    $region30: #{tpu_custom_call.1} parent=1 // pred_check
      _
    $region31: #{tpu_custom_call.1} parent=1 // pred_check_branch
      %873 = sbr.rel (0) target = $region33
    $region32: #{tpu_custom_call.1} parent=1 // pred_region
      %875 = vsyncadd [#allocation3], 0
      %s877 = sshll.u32 [#allocation2], 4
      %s878 = int_to_ptr.vmem [resolvable:$true] %s877
      %s879 = sshll.u32 %s7, 4
      %s880 = int_to_ptr.hbm [resolvable:$true] %s879
      %882 = dma.vmem_to_hbm [thread:$0]  %s878, 32, %s880, [#allocation3]
    $region33: #{tpu_custom_call.1} parent=1 // pred_fallthru
      _
    // Predicated region
    $region34: #{tpu_custom_call.1} parent=1 // pred_check
      _
    $region35: #{tpu_custom_call.1} parent=1 // pred_check_branch
      %884 = sbr.rel (0) target = $region37
    $region36: #{tpu_custom_call.1} parent=1 // pred_region
      %886 = dma.done [#allocation3], 32
    $region37: #{tpu_custom_call.1} parent=1 // pred_fallthru
      _
    %887 = vsyncpa [#allocation3], 1

</llo_original>
